<compile_context>
chip_gen: v7x
topology: tpu7x:2x2x1
jax: 0.10.0
libtpu: 0.0.40
codegen_flags: <defaults>
</compile_context>

<pallas_src>
import functools
import math
import numpy as np

import jax
import jax.numpy as jnp
from jax.experimental import pallas as pl
from jax.experimental.pallas import tpu as pltpu

NEG_SLOPE = 0.01  # nn.LeakyReLU() default negative_slope


# ----------------------------- Pallas kernel -------------------------------
def _lrelu_resample_kernel(x_ref, k_ref, o_ref, *, pack, hw_in, hw_out):
    # x_ref: (TB, pack*hw_in)   k_ref: (hw_in, hw_out)   o_ref: (TB, pack*hw_out)
    x = x_ref[...]
    y = jnp.maximum(x, NEG_SLOPE * x)                 # LeakyReLU: vmul + vmax (VPU)
    k = k_ref[...]
    outs = [
        jnp.dot(y[:, p * hw_in:(p + 1) * hw_in], k,   # no zero-block MXU waste
                preferred_element_type=jnp.float32)
        for p in range(pack)
    ]
    res = outs[0] if pack == 1 else jnp.concatenate(outs, axis=-1)
    o_ref[...] = res.astype(o_ref.dtype)              # single lane-dense store


# ------------------------ resampling matrix builders ------------------------
def _pool_matrix(n_in, kernel, stride, pad):
    """Row matrix for 1-D average pooling with count_include_pad=True (PyTorch default)."""
    n_out = (n_in + 2 * pad - kernel) // stride + 1
    m = np.zeros((n_out, n_in), np.float32)
    for i in range(n_out):
        start = i * stride - pad
        for j in range(start, start + kernel):
            if 0 <= j < n_in:
                m[i, j] = 1.0 / kernel
    return m


def _nearest_matrix(n_in, n_out):
    """Row matrix for 1-D nearest-neighbor interpolation (PyTorch 'nearest' mode)."""
    m = np.zeros((n_out, n_in), np.float32)
    scale = n_in / n_out
    for i in range(n_out):
        src = min(int(math.floor(i * scale)), n_in - 1)
        m[i, src] = 1.0
    return m


def _resample_matrices(H, W, out_size, in_rate, out_rate):
    if in_rate == 2 * out_rate:
        return _pool_matrix(H, 2, 2, 0), _pool_matrix(W, 2, 2, 0).T
    elif in_rate == 4 * out_rate:
        return _pool_matrix(H, 4, 4, 1), _pool_matrix(W, 4, 4, 1).T
    else:
        return _nearest_matrix(H, out_size), _nearest_matrix(W, out_size).T


@functools.lru_cache(maxsize=None)
def _resample_config(in_size, out_size, in_rate, out_rate):
    """Per-config cache: Kronecker-folded resample matrix (on device) + metadata."""
    A, Bm = _resample_matrices(in_size, in_size, out_size, in_rate, out_rate)
    H_out, W_out = A.shape[0], Bm.shape[1]
    hw_out = H_out * W_out
    # Planes packed per row so the output last dim is a multiple of 128 lanes.
    pack = 128 // hw_out if (hw_out < 128 and 128 % hw_out == 0) else 1
    # K[h*W + w, i*W_out + j] = A[i, h] * Bm[w, j]  ->  out_flat = y_flat @ K
    K = np.kron(A.T, Bm).astype(np.float32)          # (HW_in, HW_out)
    return jnp.asarray(K), H_out, W_out, pack        # device K reused across calls


def _vmem_capacity_bytes():
    try:
        cap = getattr(pltpu.get_tpu_info(), "vmem_capacity_bytes", None)
        if cap:
            return int(cap)
    except Exception:
        pass
    return 64 * 1024 * 1024   # conservative fallback (v7x per-TensorCore VMEM)


# ------------------------------ wrapper ------------------------------------
def lrelu_regular(x, *, in_size, out_size, in_sampling_rate, out_sampling_rate):
    """Pallas implementation of LReLu_regular.forward. x: (N, C, H, W) float32 (NCHW)."""
    N, C, H, W = x.shape
    assert H == in_size and W == in_size

    K_dev, H_out, W_out, pack = _resample_config(
        in_size, out_size, in_sampling_rate, out_sampling_rate)
    hw_in, hw_out = H * W, H_out * W_out
    row_in, row_out = pack * hw_in, pack * hw_out

    itemsize = jnp.dtype(x.dtype).itemsize
    k_bytes = int(K_dev.size) * 4

    # ---- generation-aware VMEM budget (v5e/v6e: 128 MiB, v7x: 64 MiB/TC) ----
    vmem_cap = _vmem_capacity_bytes()
    vmem_limit = min(int(vmem_cap * 0.75), 96 * 1024 * 1024)
    budget = min(vmem_cap // 2, 64 * 1024 * 1024)       # tiles + resident K
    if 2 * k_bytes > budget // 2:
        # TODO(synk): pure-VPU reshape-sum pooling path for very large spatial sizes.
        raise NotImplementedError(
            f"resample matrix ({k_bytes / 2**20:.1f} MiB) too large for VMEM budget")

    NC = N * C
    rows = -(-NC // pack)                                # ceil(NC / pack)

    # Rows per grid step: double-buffered in/out tiles + LeakyReLU temp (f32)
    # + per-plane matmul results (f32) must all fit in the budget.
    per_row_bytes = itemsize * 2 * (row_in + row_out) + 4 * (row_in + row_out)
    tb = (budget - 2 * k_bytes) // per_row_bytes
    tb = max(8, (tb // 8) * 8)                           # sublane-aligned
    if tb >= rows:
        tb = rows                                        # full-extent block (legal)
    # Guarantee >= 2 grid steps so the parallel axis can use both v7x TensorCores.
    if rows >= 16 and -(-rows // tb) < 2:
        tb = max(8, ((-(-rows // 2)) + 7) // 8 * 8)

    # Pad NC only up to a multiple of pack (<= pack-1 zero rows, sliced off below).
    nc_pad = rows * pack
    xf = x.reshape(NC, hw_in)
    if nc_pad != NC:
        xf = jnp.pad(xf, ((0, nc_pad - NC), (0, 0)))
    xp = xf.reshape(rows, row_in)

    grid = (pl.cdiv(rows, tb),)                          # partial last block masked by Pallas
    flops = 2.0 * rows * pack * hw_in * hw_out + 2.0 * rows * row_in
    bytes_accessed = itemsize * rows * (row_in + row_out) + k_bytes

    kernel = functools.partial(_lrelu_resample_kernel,
                               pack=pack, hw_in=hw_in, hw_out=hw_out)

    out = pl.pallas_call(
        kernel,
        out_shape=jax.ShapeDtypeStruct((rows, row_out), x.dtype),
        grid_spec=pltpu.PrefetchScalarGridSpec(
            num_scalar_prefetch=0,
            grid=grid,
            in_specs=[
                pl.BlockSpec((tb, row_in), lambda i: (i, 0)),
                pl.BlockSpec((hw_in, hw_out), lambda i: (0, 0)),   # K stays resident
            ],
            out_specs=pl.BlockSpec((tb, row_out), lambda i: (i, 0)),
        ),
        compiler_params=pltpu.CompilerParams(
            dimension_semantics=("parallel",),
            vmem_limit_bytes=vmem_limit,
        ),
        cost_estimate=pl.CostEstimate(
            flops=int(flops), transcendentals=0, bytes_accessed=int(bytes_accessed)),
    )(xp, K_dev)

    out = out.reshape(nc_pad, hw_out)
    if nc_pad != NC:
        out = out[:NC]
    return out.reshape(N, C, H_out, W_out)


# ------------------------------ demo / check --------------------------------
if __name__ == "__main__":
    # Module config: in_channels=out_channels=4 (unused by forward), in_size=16.
    N, C, H, W = 2, 4, 16, 16
    key = jax.random.PRNGKey(0)
    x = jax.random.normal(key, (N, C, H, W), dtype=jnp.float32)
    y_ref = jnp.where(x >= 0, x, NEG_SLOPE * x)

    # --- Branch 1: in_rate = 2*out_rate -> AvgPool2d(2, stride=2), out 8x8 ---
    out2 = lrelu_regular(x, in_size=16, out_size=8,
                         in_sampling_rate=2, out_sampling_rate=1)
    out2 = jax.block_until_ready(out2)
    ref2 = y_ref.reshape(N, C, 8, 2, 8, 2).mean(axis=(3, 5))
    assert out2.shape == (N, C, 8, 8)
    np.testing.assert_allclose(np.asarray(out2), np.asarray(ref2), rtol=1e-5, atol=1e-5)

    # --- Branch 2: in_rate = 4*out_rate -> AvgPool2d(4, stride=4, pad=1), out 4x4 ---
    out4 = lrelu_regular(x, in_size=16, out_size=4,
                         in_sampling_rate=4, out_sampling_rate=1)
    out4 = jax.block_until_ready(out4)
    yp = jnp.pad(y_ref, ((0, 0), (0, 0), (1, 1), (1, 1)))
    ref4 = yp[:, :, :16, :16].reshape(N, C, 4, 4, 4, 4).mean(axis=(3, 5))
    assert out4.shape == (N, C, 4, 4)
    np.testing.assert_allclose(np.asarray(out4), np.asarray(ref4), rtol=1e-5, atol=1e-5)

    # --- Branch 3: otherwise -> nearest interpolation to out_size=8 ---
    outn = lrelu_regular(x, in_size=16, out_size=8,
                         in_sampling_rate=3, out_sampling_rate=1)
    outn = jax.block_until_ready(outn)
    idx = (np.floor(np.arange(8) * 16 / 8)).astype(np.int32)
    refn = y_ref[:, :, idx][:, :, :, idx]
    assert outn.shape == (N, C, 8, 8)
    np.testing.assert_allclose(np.asarray(outn), np.asarray(refn), rtol=1e-5, atol=1e-5)

    print("KERNEL_OK")
</pallas_src>

<mosaic_0001>
module attributes {stable_mosaic.version = 11 : i64} {
  func.func @_lrelu_resample_kernel(%arg0: i32, %arg1: memref<4x512xf32, #tpu.memory_space<vmem>>, %arg2: memref<256x64xf32, #tpu.memory_space<vmem>>, %arg3: memref<4x128xf32, #tpu.memory_space<vmem>>) attributes {dimension_semantics = [#tpu.dimension_semantics<parallel>], iteration_bounds = array<i64: 1>, scalar_prefetch = 0 : i64, scratch_operands = 0 : i64, tpu.core_type = #tpu.core_type<tc>, window_params = [{transform_indices = @transform_0, window_bounds = array<i64: 4, 512>}, {pipeline_mode = #tpu.pipeline_mode<synchronous>, transform_indices = @transform_1, window_bounds = array<i64: 256, 64>}, {transform_indices = @transform_2, window_bounds = array<i64: 4, 128>}]} {
    %c0 = arith.constant 0 : index
    %c0_0 = arith.constant 0 : index
    %0 = vector.load %arg1[%c0, %c0_0] : memref<4x512xf32, #tpu.memory_space<vmem>>, vector<4x512xf32>
    %cst = arith.constant 0.00999999977 : f32
    %1 = vector.broadcast %cst : f32 to vector<4x512xf32>
    %2 = arith.mulf %1, %0 : vector<4x512xf32>
    %3 = arith.maximumf %0, %2 : vector<4x512xf32>
    %c0_1 = arith.constant 0 : index
    %c0_2 = arith.constant 0 : index
    %4 = vector.load %arg2[%c0_1, %c0_2] : memref<256x64xf32, #tpu.memory_space<vmem>>, vector<256x64xf32>
    %5 = vector.extract_strided_slice %3 {offsets = [0, 0], sizes = [4, 256], strides = [1, 1]} : vector<4x512xf32> to vector<4x256xf32>
    %cst_3 = arith.constant dense<0.000000e+00> : vector<4x64xf32>
    %6 = tpu.matmul %5, %4, %cst_3 {dimension_numbers = #tpu.dot_dimension_numbers<[1], [0], [0], [1], [0, 0, 1, 1], [], []>} : vector<4x256xf32>, vector<256x64xf32>, vector<4x64xf32> -> vector<4x64xf32>
    %7 = vector.extract_strided_slice %3 {offsets = [0, 256], sizes = [4, 256], strides = [1, 1]} : vector<4x512xf32> to vector<4x256xf32>
    %cst_4 = arith.constant dense<0.000000e+00> : vector<4x64xf32>
    %8 = tpu.matmul %7, %4, %cst_4 {dimension_numbers = #tpu.dot_dimension_numbers<[1], [0], [0], [1], [0, 0, 1, 1], [], []>} : vector<4x256xf32>, vector<256x64xf32>, vector<4x64xf32> -> vector<4x64xf32>
    %9 = tpu.concatenate %6, %8 in 1 : vector<4x64xf32>, vector<4x64xf32> -> vector<4x128xf32>
    %c0_5 = arith.constant 0 : index
    %c0_6 = arith.constant 0 : index
    %10 = vector.load %arg3[%c0_5, %c0_6] : memref<4x128xf32, #tpu.memory_space<vmem>>, vector<4x128xf32>
    tpu.vector_store %arg3[%c0_5, %c0_6], %9 {strides = array<i32>} : memref<4x128xf32, #tpu.memory_space<vmem>>, vector<4x128xf32>,
    return
  }
  func.func @transform_0(%arg0: i32) -> (i32, i32) {
    %c0_i32 = arith.constant 0 : i32
    %c0_i32_0 = arith.constant 0 : i32
    return %arg0, %c0_i32 : i32, i32
  }
  func.func @transform_1(%arg0: i32) -> (i32, i32) {
    %c0_i32 = arith.constant 0 : i32
    %c0_i32_0 = arith.constant 0 : i32
    %c0_i32_1 = arith.constant 0 : i32
    return %c0_i32, %c0_i32_0 : i32, i32
  }
  func.func @transform_2(%arg0: i32) -> (i32, i32) {
    %c0_i32 = arith.constant 0 : i32
    %c0_i32_0 = arith.constant 0 : i32
    return %arg0, %c0_i32 : i32, i32
  }
}

</mosaic_0001>

<llo_original>
// kernel: tpu_custom_call.1
$region0: #{tpu_custom_call.1}
  #allocation0 [shape = 'u32[]', space=smem, size = 0x4, offset = 0x4, fixed_abs, tag = 'smem constant byte address 0x4 - core index']
  #allocation1 [shape = 'u32[144,128]{1,0:T(1,128)}', space=vmem, size = 0x12000, scoped, tag = 'internal scratch']
  %s0 = inlined_call_operand.vmem [shape: f32[4,512], index: 0, kind: input, shape index: {}]
  %s1 = inlined_call_operand.vmem [shape: f32[256,64], index: 1, kind: input, shape index: {}]
  %s2 = inlined_call_operand.hbm [shape: f32[4,128], index: 2, kind: output, shape index: {}]
  %s3 = sld [smem:[#allocation0]]
  $region18: #{tpu_custom_call.1} parent=0
    _
  %s5 = ssub.s32 1, %s3
  %s6 = scalar_select 0, %s5, %s3
  $region1: #{tpu_custom_call.1} parent=0
    #allocation2 [shape = 'u8[2048]{0}', space=vmem, size = 0x800, scoped, tag = 'output window, operand 0, single buffered']
    #allocation3 [shape = 's32[1]{0}', space=sflag, size = 0x4, scoped, tag = 'scoped memory for tpu_custom_call.1']
    %7 = vsyncpa [#allocation3], 0
    // Predicated region
    $region2: #{tpu_custom_call.1} parent=1 // pred_check
      _
    $region3: #{tpu_custom_call.1} parent=1 // pred_check_branch
      %9 = sbr.rel (0) target = $region5
    $region4: #{tpu_custom_call.1} parent=1 // pred_region
      _
    $region5: #{tpu_custom_call.1} parent=1 // pred_fallthru
      _
    // Predicated region
    $region6: #{tpu_custom_call.1} parent=1 // pred_check
      _
    $region7: #{tpu_custom_call.1} parent=1 // pred_check_branch
      %11 = sbr.rel (0) target = $region9
    $region8: #{tpu_custom_call.1} parent=1 // pred_region
      _
    $region9: #{tpu_custom_call.1} parent=1 // pred_fallthru
      _
    %v12 = vld [vmem:[%s0] sm:$0xff]
    %v13 = vld [vmem:[%s0 + $0x8] sm:$0xff]
    %v14 = vmul.f32 %v12, 0.01
    %v15 = vmul.f32 %v13, 0.01
    %v16 = vmax.f32 %v12, %v14
    %v17 = vmax.f32 %v13, %v15
    %v18 = vld [vmem:[%s1] sm:$0xff]
    %v19 = vld [vmem:[%s1 + $0x8] sm:$0xff]
    %v20 = vld [vmem:[%s1 + $0x10] sm:$0xff]
    %v21 = vld [vmem:[%s1 + $0x18] sm:$0xff]
    %v22 = vld [vmem:[%s1 + $0x20] sm:$0xff]
    %v23 = vld [vmem:[%s1 + $0x28] sm:$0xff]
    %v24 = vld [vmem:[%s1 + $0x30] sm:$0xff]
    %v25 = vld [vmem:[%s1 + $0x38] sm:$0xff]
    %v26 = vld [vmem:[%s1 + $0x40] sm:$0xff]
    %v27 = vld [vmem:[%s1 + $0x48] sm:$0xff]
    %v28 = vld [vmem:[%s1 + $0x50] sm:$0xff]
    %v29 = vld [vmem:[%s1 + $0x58] sm:$0xff]
    %v30 = vld [vmem:[%s1 + $0x60] sm:$0xff]
    %v31 = vld [vmem:[%s1 + $0x68] sm:$0xff]
    %v32 = vld [vmem:[%s1 + $0x70] sm:$0xff]
    %v33 = vld [vmem:[%s1 + $0x78] sm:$0xff]
    %v34 = vld [vmem:[%s1 + $0x80] sm:$0xff]
    %v35 = vld [vmem:[%s1 + $0x88] sm:$0xff]
    %v36 = vld [vmem:[%s1 + $0x90] sm:$0xff]
    %v37 = vld [vmem:[%s1 + $0x98] sm:$0xff]
    %v38 = vld [vmem:[%s1 + $0xa0] sm:$0xff]
    %v39 = vld [vmem:[%s1 + $0xa8] sm:$0xff]
    %v40 = vld [vmem:[%s1 + $0xb0] sm:$0xff]
    %v41 = vld [vmem:[%s1 + $0xb8] sm:$0xff]
    %v42 = vld [vmem:[%s1 + $0xc0] sm:$0xff]
    %v43 = vld [vmem:[%s1 + $0xc8] sm:$0xff]
    %v44 = vld [vmem:[%s1 + $0xd0] sm:$0xff]
    %v45 = vld [vmem:[%s1 + $0xd8] sm:$0xff]
    %v46 = vld [vmem:[%s1 + $0xe0] sm:$0xff]
    %v47 = vld [vmem:[%s1 + $0xe8] sm:$0xff]
    %v48 = vld [vmem:[%s1 + $0xf0] sm:$0xff]
    %v49 = vld [vmem:[%s1 + $0xf8] sm:$0xff]
    %v51 = vcombine.high %v16, %v16
    %53 = vmatprep.subr.mxu0 0.0
    %54 = vmatpush1.msra.mxu0 %v18
    %55 = vmatprep.subr.mxu0 0.0
    %56 = vmatpush1.msra.mxu0 %v19
    %57 = vmatprep.subr.mxu0 0.0
    %58 = vmatpush1.msra.mxu0 %v20
    %59 = vmatprep.subr.mxu0 0.0
    %60 = vmatpush1.msra.mxu0 %v21
    %61 = vmatprep.subr.mxu0 0.0
    %62 = vmatpush1.msra.mxu0 %v22
    %63 = vmatprep.subr.mxu0 0.0
    %64 = vmatpush1.msra.mxu0 %v23
    %65 = vmatprep.subr.mxu0 0.0
    %66 = vmatpush1.msra.mxu0 %v24
    %67 = vmatprep.subr.mxu0 0.0
    %68 = vmatpush1.msra.mxu0 %v25
    %69 = vmatprep.subr.mxu0 0.0
    %70 = vmatpush1.msra.mxu0 %v26
    %71 = vmatprep.subr.mxu0 0.0
    %72 = vmatpush1.msra.mxu0 %v27
    %73 = vmatprep.subr.mxu0 0.0
    %74 = vmatpush1.msra.mxu0 %v28
    %75 = vmatprep.subr.mxu0 0.0
    %76 = vmatpush1.msra.mxu0 %v29
    %77 = vmatprep.subr.mxu0 0.0
    %78 = vmatpush1.msra.mxu0 %v30
    %79 = vmatprep.subr.mxu0 0.0
    %80 = vmatpush1.msra.mxu0 %v31
    %81 = vmatprep.subr.mxu0 0.0
    %82 = vmatpush1.msra.mxu0 %v32
    %83 = vmatprep.subr.mxu0 0.0
    %84 = vmatpush1.msra.mxu0 %v33
    %85 = vmatprep.subr.mxu0 0.0
    %86 = vmatpush1.msra.mxu0 %v34
    %87 = vmatprep.subr.mxu0 0.0
    %88 = vmatpush1.msra.mxu0 %v35
    %89 = vmatprep.subr.mxu0 0.0
    %90 = vmatpush1.msra.mxu0 %v36
    %91 = vmatprep.subr.mxu0 0.0
    %92 = vmatpush1.msra.mxu0 %v37
    %93 = vmatprep.subr.mxu0 0.0
    %94 = vmatpush1.msra.mxu0 %v38
    %95 = vmatprep.subr.mxu0 0.0
    %96 = vmatpush1.msra.mxu0 %v39
    %97 = vmatprep.subr.mxu0 0.0
    %98 = vmatpush1.msra.mxu0 %v40
    %99 = vmatprep.subr.mxu0 0.0
    %100 = vmatpush1.msra.mxu0 %v41
    %101 = vmatprep.subr.mxu0 0.0
    %102 = vmatpush1.msra.mxu0 %v42
    %103 = vmatprep.subr.mxu0 0.0
    %104 = vmatpush1.msra.mxu0 %v43
    %105 = vmatprep.subr.mxu0 0.0
    %106 = vmatpush1.msra.mxu0 %v44
    %107 = vmatprep.subr.mxu0 0.0
    %108 = vmatpush1.msra.mxu0 %v45
    %109 = vmatprep.subr.mxu0 0.0
    %110 = vmatpush1.msra.mxu0 %v46
    %111 = vmatprep.subr.mxu0 0.0
    %112 = vmatpush1.msra.mxu0 %v47
    %113 = vmatprep.subr.mxu0 0.0
    %114 = vmatpush1.msra.mxu0 %v48
    %115 = vmatprep.subr.mxu0 0.0
    %116 = vmatpush1.msra.mxu0 %v49
    %117 = vmatprep.mubr.f32.mxu0 %v51
    %118 = vmatmul.mubr.f32.gmra.mrb[0].mxu0 %v16
    %v119 = vpop.f32.mrb[0].mxu0
    %v120 = vadd.f32 0.0, %v119
    %v121 = vpop.f32.mrb[0].mxu0
    %122 = vdwg.mxu0
    %v124 = vcombine.high %v17, %v17
    %126 = vmatprep.subr.mxu0 0.0
    %127 = vmatpush1.msra.mxu0 %v18
    %128 = vmatprep.subr.mxu0 0.0
    %129 = vmatpush1.msra.mxu0 %v19
    %130 = vmatprep.subr.mxu0 0.0
    %131 = vmatpush1.msra.mxu0 %v20
    %132 = vmatprep.subr.mxu0 0.0
    %133 = vmatpush1.msra.mxu0 %v21
    %134 = vmatprep.subr.mxu0 0.0
    %135 = vmatpush1.msra.mxu0 %v22
    %136 = vmatprep.subr.mxu0 0.0
    %137 = vmatpush1.msra.mxu0 %v23
    %138 = vmatprep.subr.mxu0 0.0
    %139 = vmatpush1.msra.mxu0 %v24
    %140 = vmatprep.subr.mxu0 0.0
    %141 = vmatpush1.msra.mxu0 %v25
    %142 = vmatprep.subr.mxu0 0.0
    %143 = vmatpush1.msra.mxu0 %v26
    %144 = vmatprep.subr.mxu0 0.0
    %145 = vmatpush1.msra.mxu0 %v27
    %146 = vmatprep.subr.mxu0 0.0
    %147 = vmatpush1.msra.mxu0 %v28
    %148 = vmatprep.subr.mxu0 0.0
    %149 = vmatpush1.msra.mxu0 %v29
    %150 = vmatprep.subr.mxu0 0.0
    %151 = vmatpush1.msra.mxu0 %v30
    %152 = vmatprep.subr.mxu0 0.0
    %153 = vmatpush1.msra.mxu0 %v31
    %154 = vmatprep.subr.mxu0 0.0
    %155 = vmatpush1.msra.mxu0 %v32
    %156 = vmatprep.subr.mxu0 0.0
    %157 = vmatpush1.msra.mxu0 %v33
    %158 = vmatprep.subr.mxu0 0.0
    %159 = vmatpush1.msra.mxu0 %v34
    %160 = vmatprep.subr.mxu0 0.0
    %161 = vmatpush1.msra.mxu0 %v35
    %162 = vmatprep.subr.mxu0 0.0
    %163 = vmatpush1.msra.mxu0 %v36
    %164 = vmatprep.subr.mxu0 0.0
    %165 = vmatpush1.msra.mxu0 %v37
    %166 = vmatprep.subr.mxu0 0.0
    %167 = vmatpush1.msra.mxu0 %v38
    %168 = vmatprep.subr.mxu0 0.0
    %169 = vmatpush1.msra.mxu0 %v39
    %170 = vmatprep.subr.mxu0 0.0
    %171 = vmatpush1.msra.mxu0 %v40
    %172 = vmatprep.subr.mxu0 0.0
    %173 = vmatpush1.msra.mxu0 %v41
    %174 = vmatprep.subr.mxu0 0.0
    %175 = vmatpush1.msra.mxu0 %v42
    %176 = vmatprep.subr.mxu0 0.0
    %177 = vmatpush1.msra.mxu0 %v43
    %178 = vmatprep.subr.mxu0 0.0
    %179 = vmatpush1.msra.mxu0 %v44
    %180 = vmatprep.subr.mxu0 0.0
    %181 = vmatpush1.msra.mxu0 %v45
    %182 = vmatprep.subr.mxu0 0.0
    %183 = vmatpush1.msra.mxu0 %v46
    %184 = vmatprep.subr.mxu0 0.0
    %185 = vmatpush1.msra.mxu0 %v47
    %186 = vmatprep.subr.mxu0 0.0
    %187 = vmatpush1.msra.mxu0 %v48
    %188 = vmatprep.subr.mxu0 0.0
    %189 = vmatpush1.msra.mxu0 %v49
    %190 = vmatprep.mubr.f32.mxu0 %v124
    %191 = vmatmul.mubr.f32.gmra.mrb[0].mxu0 %v17
    %v192 = vpop.f32.mrb[0].mxu0
    %v193 = vadd.f32 0.0, %v192
    %v194 = vpop.f32.mrb[0].mxu0
    %195 = vdwg.mxu0
    %197 = vrot.lane.b32.xlu0 %v193, 64
    %v198 = vpop.permute.xlu0 %197
    %vm200 = vcmask 523264
    %v201 = vsel %vm200, %v120, %v198
    %202 = vst [vmem:[#allocation2] sm:$0xf] %v201
    // Predicated region
    $region10: #{tpu_custom_call.1} parent=1 // pred_check
      _
    $region11: #{tpu_custom_call.1} parent=1 // pred_check_branch
      %204 = sbr.rel (0) target = $region13
    $region12: #{tpu_custom_call.1} parent=1 // pred_region
      %s206 = ssub.s32 64, 64
      %207 = vsyncadd [#allocation3], %s206
      %s209 = sshll.u32 [#allocation2], 4
      %s210 = int_to_ptr.vmem [resolvable:$true] %s209
      %212 = dma.vmem_to_hbm [thread:$0]  %s210, 64, %s2, [#allocation3]
    $region13: #{tpu_custom_call.1} parent=1 // pred_fallthru
      _
    // Predicated region
    $region14: #{tpu_custom_call.1} parent=1 // pred_check
      _
    $region15: #{tpu_custom_call.1} parent=1 // pred_check_branch
      %214 = sbr.rel (0) target = $region17
    $region16: #{tpu_custom_call.1} parent=1 // pred_region
      %215 = dma.done [#allocation3], 64
    $region17: #{tpu_custom_call.1} parent=1 // pred_fallthru
      _
    %216 = vsyncpa [#allocation3], 1

</llo_original>
